<compile_context>
chip_gen: v5e
topology: v5e:2x2
jax: 0.10.0
libtpu: 0.0.40
codegen_flags: <defaults>
</compile_context>

<pallas_src>
import functools

import numpy as np

import jax
import jax.numpy as jnp
from jax import lax
from jax.experimental import pallas as pl
from jax.experimental.pallas import tpu as pltpu

EPS = 1e-5  # nn.BatchNorm2d default


def _build_tap_mask(N, H, W, Cin_pad):
    """Compile-time zero-padding mask, pre-expanded to the im2col patch shape.

    Row block [t*Cin_pad, (t+1)*Cin_pad) holds tap t's validity mask (1.0 where
    the 3x3 tap (kh, kw) reads a real in-image pixel, 0.0 where it would read
    the implicit zero padding or wrap across a row/image boundary).
    """
    HW = H * W
    h_idx = np.arange(HW) // W
    w_idx = np.arange(HW) % W
    rows = []
    for kh in range(3):
        for kw in range(3):
            dh, dw = kh - 1, kw - 1
            valid = ((h_idx + dh >= 0) & (h_idx + dh < H) &
                     (w_idx + dw >= 0) & (w_idx + dw < W))
            rows.append(valid.astype(np.float32))
    mask9 = np.stack(rows, axis=0)          # (9, HW)
    mask9 = np.tile(mask9, (1, N))          # (9, N*HW) -- pattern repeats per image
    mask = np.repeat(mask9, Cin_pad, axis=0)  # (9*Cin_pad, N*HW), sublane-aligned blocks
    return jnp.asarray(mask)


def fused_conv_bn_relu_kernel(N, H, W, x_ref, w_ref, mask_ref, gamma_ref,
                              beta_ref, o_ref):
    """Fused 3x3 conv (pad=1) + training-mode BatchNorm + ReLU for the whole batch.

    x_ref    : (Cin_pad, N*HW)   batch slab; channels on sublanes, pixels on lanes
    w_ref    : (Cout, 9*Cin_pad) weights, tap-major K: k = (kh*3+kw)*Cin_pad + c
    mask_ref : (9*Cin_pad, N*HW) precomputed zero-padding mask (matches patch layout)
    gamma_ref: (Cout, 1)         BN weight
    beta_ref : (Cout, 1)         BN bias
    o_ref    : (N, Cout, HW)     final output (post-BN, post-ReLU)
    """
    HW = H * W
    NHW = N * HW
    x = x_ref[...]  # (Cin_pad, N*HW) f32

    # im2col patch: 9 lane rotations (XLU) of the whole batch slab.  The roll is
    # taken over the combined N*HW lane axis; the mask guarantees that every
    # *valid* position stays inside its own image, and zeroes the rest (this
    # implements the 1-pixel zero padding and kills row/image wraparound).
    taps = []
    for kh in range(3):
        for kw in range(3):
            d = (kh - 1) * W + (kw - 1)
            shift = (-d) % NHW  # rolled[p] = x[p + d]
            taps.append(x if shift == 0 else pltpu.roll(x, shift=shift, axis=1))
    patch = jnp.concatenate(taps, axis=0)   # (9*Cin_pad, N*HW), aligned 8-row blocks
    patch = patch * mask_ref[...]           # single aligned VPU multiply

    # One MXU matmul, K = 9*Cin_pad, lane-dense (Cout, N*HW) f32 result.
    y = jnp.dot(w_ref[...], patch, preferred_element_type=jnp.float32)

    # Training-mode BatchNorm over (N, H, W) per channel.  y is fully resident,
    # so use the numerically safe centered variance, then fused affine + ReLU.
    inv_count = 1.0 / jnp.float32(NHW)
    mean = jnp.sum(y, axis=1, keepdims=True) * inv_count          # (Cout, 1)
    centered = y - mean
    var = jnp.sum(centered * centered, axis=1, keepdims=True) * inv_count
    scale = gamma_ref[...] * lax.rsqrt(var + EPS)                 # (Cout, 1)
    out = jnp.maximum(centered * scale + beta_ref[...], 0.0)      # (Cout, N*HW)

    # Lane-dense per-image stores back into the (N, Cout, HW) output.  The lane
    # slices are static and 128-aligned (HW is a multiple of 128) -> unmasked vst.
    for n in range(N):
        o_ref[n] = out[:, n * HW:(n + 1) * HW]


def conv_block_forward(x_nchw, w_hwio, bias, gamma, beta):
    """x_nchw: (N, Cin, H, W) f32 -> (N, Cout, H, W) f32 (training-mode BN)."""
    N, Cin, H, W = x_nchw.shape
    Cout = w_hwio.shape[-1]
    HW = H * W
    Cin_pad = ((Cin + 7) // 8) * 8  # each tap becomes a full sublane tile

    # Layout plumbing (tiny, one-time): fold N onto the lane axis and pad Cin.
    x_flat = jnp.transpose(x_nchw.reshape(N, Cin, HW), (1, 0, 2)).reshape(Cin, N * HW)
    x_p = jnp.pad(x_flat, ((0, Cin_pad - Cin), (0, 0)))            # (Cin_pad, N*HW)

    # (3,3,Cin,Cout) -> (Cout, 9*Cin_pad), tap-major K ordering (matches the
    # in-kernel patch concatenation), zero-padded channels contribute nothing.
    w_t = jnp.transpose(w_hwio, (3, 0, 1, 2))                      # (Cout, 3, 3, Cin)
    w_t = jnp.pad(w_t, ((0, 0), (0, 0), (0, 0), (0, Cin_pad - Cin)))
    w2 = w_t.reshape(Cout, 9 * Cin_pad)

    # Conv bias intentionally unused: the batch mean absorbs it exactly under
    # training-mode BN.
    # TODO(synk): re-add the bias if this block is ever run with eval-mode
    #             (running) BatchNorm statistics.
    del bias

    mask = _build_tap_mask(N, H, W, Cin_pad)                       # (9*Cin_pad, N*HW)

    kernel = functools.partial(fused_conv_bn_relu_kernel, N, H, W)
    out = pl.pallas_call(
        kernel,
        out_shape=jax.ShapeDtypeStruct((N, Cout, HW), jnp.float32),
        grid=(1,),
        in_specs=[
            pl.BlockSpec((Cin_pad, N * HW), lambda i: (0, 0)),
            pl.BlockSpec((Cout, 9 * Cin_pad), lambda i: (0, 0)),
            pl.BlockSpec((9 * Cin_pad, N * HW), lambda i: (0, 0)),
            pl.BlockSpec((Cout, 1), lambda i: (0, 0)),
            pl.BlockSpec((Cout, 1), lambda i: (0, 0)),
        ],
        out_specs=pl.BlockSpec((N, Cout, HW), lambda i: (0, 0, 0)),
        compiler_params=pltpu.CompilerParams(
            dimension_semantics=("arbitrary",)),
    )(x_p, w2, mask, gamma.reshape(Cout, 1), beta.reshape(Cout, 1))

    # Metadata-only reshape back to NCHW.
    return out.reshape(N, Cout, H, W)


def reference_forward(x_nchw, w_hwio, bias, gamma, beta):
    """Pure-JAX reference matching PyTorch _ConvBlock.forward (training-mode BN)."""
    w_oihw = jnp.transpose(w_hwio, (3, 2, 0, 1))
    y = jax.lax.conv_general_dilated(
        x_nchw, w_oihw, window_strides=(1, 1), padding="SAME",
        dimension_numbers=("NCHW", "OIHW", "NCHW"))
    y = y + bias[None, :, None, None]
    mean = jnp.mean(y, axis=(0, 2, 3), keepdims=True)
    var = jnp.mean((y - mean) ** 2, axis=(0, 2, 3), keepdims=True)
    y = (y - mean) * jax.lax.rsqrt(var + EPS)
    y = y * gamma[None, :, None, None] + beta[None, :, None, None]
    return jnp.maximum(y, 0.0)


if __name__ == "__main__":
    # Small shapes consistent with the module: N=2, Cin=4, Cout=8, H=W=16
    N, Cin, Cout, H, W = 2, 4, 8, 16, 16

    key = jax.random.PRNGKey(0)
    kx, kw, kb, kg, kbe = jax.random.split(key, 5)

    x = jax.random.normal(kx, (N, Cin, H, W), dtype=jnp.float32)

    # Deterministic parameter init (PyTorch-like uniform bound for conv)
    fan_in = Cin * 3 * 3
    bound = 1.0 / jnp.sqrt(jnp.float32(fan_in))
    w_hwio = jax.random.uniform(kw, (3, 3, Cin, Cout), jnp.float32, -bound, bound)
    bias = jax.random.uniform(kb, (Cout,), jnp.float32, -bound, bound)
    gamma = jax.random.uniform(kg, (Cout,), jnp.float32, 0.5, 1.5)
    beta = 0.1 * jax.random.normal(kbe, (Cout,), dtype=jnp.float32)

    out = conv_block_forward(x, w_hwio, bias, gamma, beta)
    out = jax.block_until_ready(out)

    ref = reference_forward(x, w_hwio, bias, gamma, beta)
    assert out.shape == (N, Cout, H, W)
    assert jnp.allclose(out, ref, atol=2e-3, rtol=2e-3), "mismatch vs reference"

    print("KERNEL_OK")
</pallas_src>

<mosaic_0001>
module attributes {stable_mosaic.version = 11 : i64} {
  func.func @fused_conv_bn_relu_kernel(%arg0: i32, %arg1: memref<8x512xf32, #tpu.memory_space<vmem>>, %arg2: memref<8x72xf32, #tpu.memory_space<vmem>>, %arg3: memref<72x512xf32, #tpu.memory_space<vmem>>, %arg4: memref<8x1xf32, #tpu.memory_space<vmem>>, %arg5: memref<8x1xf32, #tpu.memory_space<vmem>>, %arg6: memref<2x8x256xf32, #tpu.memory_space<vmem>>) attributes {dimension_semantics = [#tpu.dimension_semantics<arbitrary>], iteration_bounds = array<i64: 1>, scalar_prefetch = 0 : i64, scratch_operands = 0 : i64, tpu.core_type = #tpu.core_type<tc>, window_params = [{pipeline_mode = #tpu.pipeline_mode<synchronous>, transform_indices = @transform_0, window_bounds = array<i64: 8, 512>}, {pipeline_mode = #tpu.pipeline_mode<synchronous>, transform_indices = @transform_1, window_bounds = array<i64: 8, 72>}, {pipeline_mode = #tpu.pipeline_mode<synchronous>, transform_indices = @transform_2, window_bounds = array<i64: 72, 512>}, {pipeline_mode = #tpu.pipeline_mode<synchronous>, transform_indices = @transform_3, window_bounds = array<i64: 8, 1>}, {pipeline_mode = #tpu.pipeline_mode<synchronous>, transform_indices = @transform_4, window_bounds = array<i64: 8, 1>}, {pipeline_mode = #tpu.pipeline_mode<synchronous>, transform_indices = @transform_5, window_bounds = array<i64: 2, 8, 256>}]} {
    %c0 = arith.constant 0 : index
    %c0_0 = arith.constant 0 : index
    %0 = vector.load %arg1[%c0, %c0_0] : memref<8x512xf32, #tpu.memory_space<vmem>>, vector<8x512xf32>
    %c17_i32 = arith.constant 17 : i32
    %1 = tpu.dynamic_rotate %0 by %c17_i32 dim 1 : vector<8x512xf32>, i32 -> vector<8x512xf32>
    %c16_i32 = arith.constant 16 : i32
    %2 = tpu.dynamic_rotate %0 by %c16_i32 dim 1 : vector<8x512xf32>, i32 -> vector<8x512xf32>
    %c15_i32 = arith.constant 15 : i32
    %3 = tpu.dynamic_rotate %0 by %c15_i32 dim 1 : vector<8x512xf32>, i32 -> vector<8x512xf32>
    %c1_i32 = arith.constant 1 : i32
    %4 = tpu.dynamic_rotate %0 by %c1_i32 dim 1 : vector<8x512xf32>, i32 -> vector<8x512xf32>
    %c511_i32 = arith.constant 511 : i32
    %5 = tpu.dynamic_rotate %0 by %c511_i32 dim 1 : vector<8x512xf32>, i32 -> vector<8x512xf32>
    %c497_i32 = arith.constant 497 : i32
    %6 = tpu.dynamic_rotate %0 by %c497_i32 dim 1 : vector<8x512xf32>, i32 -> vector<8x512xf32>
    %c496_i32 = arith.constant 496 : i32
    %7 = tpu.dynamic_rotate %0 by %c496_i32 dim 1 : vector<8x512xf32>, i32 -> vector<8x512xf32>
    %c495_i32 = arith.constant 495 : i32
    %8 = tpu.dynamic_rotate %0 by %c495_i32 dim 1 : vector<8x512xf32>, i32 -> vector<8x512xf32>
    %9 = tpu.concatenate %1, %2, %3, %4, %0, %5, %6, %7, %8 in 0 : vector<8x512xf32>, vector<8x512xf32>, vector<8x512xf32>, vector<8x512xf32>, vector<8x512xf32>, vector<8x512xf32>, vector<8x512xf32>, vector<8x512xf32>, vector<8x512xf32> -> vector<72x512xf32>
    %c0_1 = arith.constant 0 : index
    %c0_2 = arith.constant 0 : index
    %10 = vector.load %arg3[%c0_1, %c0_2] : memref<72x512xf32, #tpu.memory_space<vmem>>, vector<72x512xf32>
    %11 = arith.mulf %9, %10 : vector<72x512xf32>
    %c0_3 = arith.constant 0 : index
    %c0_4 = arith.constant 0 : index
    %12 = vector.load %arg2[%c0_3, %c0_4] : memref<8x72xf32, #tpu.memory_space<vmem>>, vector<8x72xf32>
    %cst = arith.constant dense<0.000000e+00> : vector<8x512xf32>
    %13 = tpu.matmul %12, %11, %cst {dimension_numbers = #tpu.dot_dimension_numbers<[1], [0], [0], [1], [0, 0, 1, 1], [], []>} : vector<8x72xf32>, vector<72x512xf32>, vector<8x512xf32> -> vector<8x512xf32>
    %cst_5 = arith.constant 1.000000e+00 : f32
    %cst_6 = arith.constant 5.120000e+02 : f32
    %14 = arith.divf %cst_5, %cst_6 : f32
    %cst_7 = arith.constant dense<0.000000e+00> : vector<8xf32>
    %15 = vector.multi_reduction <add>, %13, %cst_7 [1] : vector<8x512xf32> to vector<8xf32>
    %16 = vector.shape_cast %15 : vector<8xf32> to vector<8x1xf32>
    %17 = vector.broadcast %14 : f32 to vector<8x1xf32>
    %18 = arith.mulf %16, %17 : vector<8x1xf32>
    %19 = vector.broadcast %18 : vector<8x1xf32> to vector<8x512xf32>
    %20 = arith.subf %13, %19 : vector<8x512xf32>
    %21 = arith.mulf %20, %20 : vector<8x512xf32>
    %cst_8 = arith.constant dense<0.000000e+00> : vector<8xf32>
    %22 = vector.multi_reduction <add>, %21, %cst_8 [1] : vector<8x512xf32> to vector<8xf32>
    %23 = vector.shape_cast %22 : vector<8xf32> to vector<8x1xf32>
    %24 = vector.broadcast %14 : f32 to vector<8x1xf32>
    %25 = arith.mulf %23, %24 : vector<8x1xf32>
    %c0_9 = arith.constant 0 : index
    %c0_10 = arith.constant 0 : index
    %26 = vector.load %arg4[%c0_9, %c0_10] : memref<8x1xf32, #tpu.memory_space<vmem>>, vector<8x1xf32>
    %cst_11 = arith.constant 9.99999974E-6 : f32
    %27 = vector.broadcast %cst_11 : f32 to vector<8x1xf32>
    %28 = arith.addf %25, %27 : vector<8x1xf32>
    %29 = math.rsqrt %28 : vector<8x1xf32>
    %30 = arith.mulf %26, %29 : vector<8x1xf32>
    %31 = vector.broadcast %30 : vector<8x1xf32> to vector<8x512xf32>
    %32 = arith.mulf %20, %31 : vector<8x512xf32>
    %c0_12 = arith.constant 0 : index
    %c0_13 = arith.constant 0 : index
    %33 = vector.load %arg5[%c0_12, %c0_13] : memref<8x1xf32, #tpu.memory_space<vmem>>, vector<8x1xf32>
    %34 = vector.broadcast %33 : vector<8x1xf32> to vector<8x512xf32>
    %35 = arith.addf %32, %34 : vector<8x512xf32>
    %cst_14 = arith.constant 0.000000e+00 : f32
    %36 = vector.broadcast %cst_14 : f32 to vector<8x512xf32>
    %37 = arith.maximumf %35, %36 : vector<8x512xf32>
    %38 = vector.extract_strided_slice %37 {offsets = [0, 0], sizes = [8, 256], strides = [1, 1]} : vector<8x512xf32> to vector<8x256xf32>
    %c0_15 = arith.constant 0 : index
    %c0_16 = arith.constant 0 : index
    %c0_17 = arith.constant 0 : index
    %39 = vector.load %arg6[%c0_15, %c0_16, %c0_17] : memref<2x8x256xf32, #tpu.memory_space<vmem>>, vector<1x8x256xf32>
    %40 = vector.shape_cast %39 : vector<1x8x256xf32> to vector<8x256xf32>
    %41 = vector.shape_cast %38 : vector<8x256xf32> to vector<1x8x256xf32>
    tpu.vector_store %arg6[%c0_15, %c0_16, %c0_17], %41 {strides = array<i32>} : memref<2x8x256xf32, #tpu.memory_space<vmem>>, vector<1x8x256xf32>,
    %42 = vector.extract_strided_slice %37 {offsets = [0, 256], sizes = [8, 256], strides = [1, 1]} : vector<8x512xf32> to vector<8x256xf32>
    %c1 = arith.constant 1 : index
    %c0_18 = arith.constant 0 : index
    %c0_19 = arith.constant 0 : index
    %43 = vector.load %arg6[%c1, %c0_18, %c0_19] : memref<2x8x256xf32, #tpu.memory_space<vmem>>, vector<1x8x256xf32>
    %44 = vector.shape_cast %43 : vector<1x8x256xf32> to vector<8x256xf32>
    %45 = vector.shape_cast %42 : vector<8x256xf32> to vector<1x8x256xf32>
    tpu.vector_store %arg6[%c1, %c0_18, %c0_19], %45 {strides = array<i32>} : memref<2x8x256xf32, #tpu.memory_space<vmem>>, vector<1x8x256xf32>,
    return
  }
  func.func @transform_0(%arg0: i32) -> (i32, i32) {
    %c0_i32 = arith.constant 0 : i32
    %c0_i32_0 = arith.constant 0 : i32
    %c0_i32_1 = arith.constant 0 : i32
    return %c0_i32, %c0_i32_0 : i32, i32
  }
  func.func @transform_1(%arg0: i32) -> (i32, i32) {
    %c0_i32 = arith.constant 0 : i32
    %c0_i32_0 = arith.constant 0 : i32
    %c0_i32_1 = arith.constant 0 : i32
    return %c0_i32, %c0_i32_0 : i32, i32
  }
  func.func @transform_2(%arg0: i32) -> (i32, i32) {
    %c0_i32 = arith.constant 0 : i32
    %c0_i32_0 = arith.constant 0 : i32
    %c0_i32_1 = arith.constant 0 : i32
    return %c0_i32, %c0_i32_0 : i32, i32
  }
  func.func @transform_3(%arg0: i32) -> (i32, i32) {
    %c0_i32 = arith.constant 0 : i32
    %c0_i32_0 = arith.constant 0 : i32
    %c0_i32_1 = arith.constant 0 : i32
    return %c0_i32, %c0_i32_0 : i32, i32
  }
  func.func @transform_4(%arg0: i32) -> (i32, i32) {
    %c0_i32 = arith.constant 0 : i32
    %c0_i32_0 = arith.constant 0 : i32
    %c0_i32_1 = arith.constant 0 : i32
    return %c0_i32, %c0_i32_0 : i32, i32
  }
  func.func @transform_5(%arg0: i32) -> (i32, i32, i32) {
    %c0_i32 = arith.constant 0 : i32
    %c0_i32_0 = arith.constant 0 : i32
    %c0_i32_1 = arith.constant 0 : i32
    %c0_i32_2 = arith.constant 0 : i32
    return %c0_i32, %c0_i32_0, %c0_i32_1 : i32, i32, i32
  }
}

</mosaic_0001>

<llo_original>
// kernel: tpu_custom_call.1
$region0: #{tpu_custom_call.1}
  #allocation0 [shape = 'u32[]', space=smem, size = 0x4, offset = 0x4, fixed_abs, tag = 'smem constant byte address 0x4 - core index']
  #allocation1 [shape = 'u32[72,128]{1,0:T(1,128)}', space=vmem, size = 0x9000, scoped, tag = 'internal scratch']
  %s0 = inlined_call_operand.hbm [shape: f32[8,512], index: 0, kind: input, shape index: {}]
  %s1 = inlined_call_operand.vmem [shape: f32[8,72], index: 1, kind: input, shape index: {}]
  %s2 = inlined_call_operand.hbm [shape: f32[72,512], index: 2, kind: input, shape index: {}]
  %s3 = inlined_call_operand.vmem [shape: f32[8,1], index: 3, kind: input, shape index: {}]
  %s4 = inlined_call_operand.vmem [shape: f32[8,1], index: 4, kind: input, shape index: {}]
  %s5 = inlined_call_operand.hbm [shape: f32[2,8,256], index: 5, kind: output, shape index: {}]
  %s6 = sld [smem:[#allocation0]]
  $region38: #{tpu_custom_call.1} parent=0
    _
  %s8 = ssub.s32 1, %s6
  %s9 = scalar_select 0, %s8, %s6
  $region1: #{tpu_custom_call.1} parent=0
    #allocation2 [shape = 'u8[16384]{0}', space=vmem, size = 0x4000, scoped, tag = 'input window, operand 0, single buffered']
    #allocation3 [shape = 's32[1]{0}', space=sflag, size = 0x4, scoped, tag = 'scoped memory for tpu_custom_call.1']
    #allocation4 [shape = 's32[1]{0}', space=sflag, size = 0x4, scoped, tag = 'scoped memory for tpu_custom_call.1']
    #allocation5 [shape = 'u8[147456]{0}', space=vmem, size = 0x24000, scoped, tag = 'input window, operand 2, single buffered']
    #allocation6 [shape = 's32[1]{0}', space=sflag, size = 0x4, scoped, tag = 'scoped memory for tpu_custom_call.1']
    #allocation7 [shape = 'u8[16384]{0}', space=vmem, size = 0x4000, scoped, tag = 'output window, operand 0, single buffered']
    %10 = vsyncpa [#allocation3], 0
    %11 = vsyncpa [#allocation6], 0
    %12 = vsyncpa [#allocation4], 0
    // Predicated region
    $region2: #{tpu_custom_call.1} parent=1 // pred_check
      _
    $region3: #{tpu_custom_call.1} parent=1 // pred_check_branch
      %14 = sbr.rel (0) target = $region5
    $region4: #{tpu_custom_call.1} parent=1 // pred_region
      %16 = vsyncadd [#allocation3], 0
      %s18 = sshll.u32 %s0, 4
      %s19 = int_to_ptr.hbm [resolvable:$true] %s18
      %s20 = sshll.u32 [#allocation2], 4
      %s21 = int_to_ptr.vmem [resolvable:$true] %s20
      %23 = dma.hbm_to_vmem [thread:$0]  %s19, 512, %s21, [#allocation3]
    $region5: #{tpu_custom_call.1} parent=1 // pred_fallthru
      _
    // Predicated region
    $region6: #{tpu_custom_call.1} parent=1 // pred_check
      _
    $region7: #{tpu_custom_call.1} parent=1 // pred_check_branch
      %25 = sbr.rel (0) target = $region9
    $region8: #{tpu_custom_call.1} parent=1 // pred_region
      _
    $region9: #{tpu_custom_call.1} parent=1 // pred_fallthru
      _
    // Predicated region
    $region10: #{tpu_custom_call.1} parent=1 // pred_check
      _
    $region11: #{tpu_custom_call.1} parent=1 // pred_check_branch
      %27 = sbr.rel (0) target = $region13
    $region12: #{tpu_custom_call.1} parent=1 // pred_region
      %29 = vsyncadd [#allocation6], 0
      %s30 = sshll.u32 %s2, 4
      %s31 = int_to_ptr.hbm [resolvable:$true] %s30
      %s32 = sshll.u32 [#allocation5], 4
      %s33 = int_to_ptr.vmem [resolvable:$true] %s32
      %38 = dma.hbm_to_vmem [thread:$0]  %s31, 4608, %s33, [#allocation6], 512, 512, 32
    $region13: #{tpu_custom_call.1} parent=1 // pred_fallthru
      _
    // Predicated region
    $region14: #{tpu_custom_call.1} parent=1 // pred_check
      _
    $region15: #{tpu_custom_call.1} parent=1 // pred_check_branch
      %40 = sbr.rel (0) target = $region17
    $region16: #{tpu_custom_call.1} parent=1 // pred_region
      _
    $region17: #{tpu_custom_call.1} parent=1 // pred_fallthru
      _
    // Predicated region
    $region18: #{tpu_custom_call.1} parent=1 // pred_check
      _
    $region19: #{tpu_custom_call.1} parent=1 // pred_check_branch
      %42 = sbr.rel (0) target = $region21
    $region20: #{tpu_custom_call.1} parent=1 // pred_region
      _
    $region21: #{tpu_custom_call.1} parent=1 // pred_fallthru
      _
    // Predicated region
    $region22: #{tpu_custom_call.1} parent=1 // pred_check
      _
    $region23: #{tpu_custom_call.1} parent=1 // pred_check_branch
      %44 = sbr.rel (0) target = $region25
    $region24: #{tpu_custom_call.1} parent=1 // pred_region
      %46 = dma.done [#allocation3], 512
    $region25: #{tpu_custom_call.1} parent=1 // pred_fallthru
      _
    // Predicated region
    $region26: #{tpu_custom_call.1} parent=1 // pred_check
      _
    $region27: #{tpu_custom_call.1} parent=1 // pred_check_branch
      %48 = sbr.rel (0) target = $region29
    $region28: #{tpu_custom_call.1} parent=1 // pred_region
      %50 = dma.done [#allocation6], 4608
    $region29: #{tpu_custom_call.1} parent=1 // pred_fallthru
      _
    %v51 = vld [vmem:[#allocation2] sm:$0xff]
    %v52 = vld [vmem:[#allocation2 + $0x8] sm:$0xff]
    %v53 = vld [vmem:[#allocation2 + $0x10] sm:$0xff]
    %v54 = vld [vmem:[#allocation2 + $0x18] sm:$0xff]
    %55 = vrot.lane.b32.xlu0 %v51, 17
    %v56 = vpop.permute.xlu0 %55
    %57 = vrot.lane.b32.xlu0 %v52, 17
    %v58 = vpop.permute.xlu0 %57
    %59 = vrot.lane.b32.xlu0 %v53, 17
    %v60 = vpop.permute.xlu0 %59
    %61 = vrot.lane.b32.xlu0 %v54, 17
    %v62 = vpop.permute.xlu0 %61
    %v63 = vlaneseq
    %v64 = vand.u32 %v63, 127
    %vm65 = vcmp.lt.s32.totalorder %v64, 17
    %v66 = vsel %vm65, %v60, %v62
    %v67 = vsel %vm65, %v58, %v60
    %v68 = vsel %vm65, %v56, %v58
    %v69 = vsel %vm65, %v62, %v56
    %70 = vrot.lane.b32.xlu0 %v51, 16
    %v71 = vpop.permute.xlu0 %70
    %72 = vrot.lane.b32.xlu0 %v52, 16
    %v73 = vpop.permute.xlu0 %72
    %74 = vrot.lane.b32.xlu0 %v53, 16
    %v75 = vpop.permute.xlu0 %74
    %76 = vrot.lane.b32.xlu0 %v54, 16
    %v77 = vpop.permute.xlu0 %76
    %vm78 = vcmp.lt.s32.totalorder %v64, 16
    %v79 = vsel %vm78, %v75, %v77
    %v80 = vsel %vm78, %v73, %v75
    %v81 = vsel %vm78, %v71, %v73
    %v82 = vsel %vm78, %v77, %v71
    %83 = vrot.lane.b32.xlu0 %v51, 15
    %v84 = vpop.permute.xlu0 %83
    %85 = vrot.lane.b32.xlu0 %v52, 15
    %v86 = vpop.permute.xlu0 %85
    %87 = vrot.lane.b32.xlu0 %v53, 15
    %v88 = vpop.permute.xlu0 %87
    %89 = vrot.lane.b32.xlu0 %v54, 15
    %v90 = vpop.permute.xlu0 %89
    %vm91 = vcmp.lt.s32.totalorder %v64, 15
    %v92 = vsel %vm91, %v88, %v90
    %v93 = vsel %vm91, %v86, %v88
    %v94 = vsel %vm91, %v84, %v86
    %v95 = vsel %vm91, %v90, %v84
    %96 = vrot.lane.b32.xlu0 %v51, 1
    %v97 = vpop.permute.xlu0 %96
    %98 = vrot.lane.b32.xlu0 %v52, 1
    %v99 = vpop.permute.xlu0 %98
    %100 = vrot.lane.b32.xlu0 %v53, 1
    %v101 = vpop.permute.xlu0 %100
    %102 = vrot.lane.b32.xlu0 %v54, 1
    %v103 = vpop.permute.xlu0 %102
    %vm104 = vcmp.lt.s32.totalorder %v64, 1
    %v105 = vsel %vm104, %v101, %v103
    %v106 = vsel %vm104, %v99, %v101
    %v107 = vsel %vm104, %v97, %v99
    %v108 = vsel %vm104, %v103, %v97
    %109 = vrot.lane.b32.xlu0 %v51, 127
    %v110 = vpop.permute.xlu0 %109
    %111 = vrot.lane.b32.xlu0 %v52, 127
    %v112 = vpop.permute.xlu0 %111
    %113 = vrot.lane.b32.xlu0 %v53, 127
    %v114 = vpop.permute.xlu0 %113
    %115 = vrot.lane.b32.xlu0 %v54, 127
    %v116 = vpop.permute.xlu0 %115
    %vm117 = vcmp.lt.s32.totalorder %v64, 127
    %v118 = vsel %vm117, %v114, %v116
    %v119 = vsel %vm117, %v112, %v114
    %v120 = vsel %vm117, %v110, %v112
    %v121 = vsel %vm117, %v116, %v110
    %122 = vrot.lane.b32.xlu0 %v51, 113
    %v123 = vpop.permute.xlu0 %122
    %124 = vrot.lane.b32.xlu0 %v52, 113
    %v125 = vpop.permute.xlu0 %124
    %126 = vrot.lane.b32.xlu0 %v53, 113
    %v127 = vpop.permute.xlu0 %126
    %128 = vrot.lane.b32.xlu0 %v54, 113
    %v129 = vpop.permute.xlu0 %128
    %vm130 = vcmp.lt.s32.totalorder %v64, 113
    %v131 = vsel %vm130, %v127, %v129
    %v132 = vsel %vm130, %v125, %v127
    %v133 = vsel %vm130, %v123, %v125
    %v134 = vsel %vm130, %v129, %v123
    %135 = vrot.lane.b32.xlu0 %v51, 112
    %v136 = vpop.permute.xlu0 %135
    %137 = vrot.lane.b32.xlu0 %v52, 112
    %v138 = vpop.permute.xlu0 %137
    %139 = vrot.lane.b32.xlu0 %v53, 112
    %v140 = vpop.permute.xlu0 %139
    %141 = vrot.lane.b32.xlu0 %v54, 112
    %v142 = vpop.permute.xlu0 %141
    %vm143 = vcmp.lt.s32.totalorder %v64, 112
    %v144 = vsel %vm143, %v140, %v142
    %v145 = vsel %vm143, %v138, %v140
    %v146 = vsel %vm143, %v136, %v138
    %v147 = vsel %vm143, %v142, %v136
    %148 = vrot.lane.b32.xlu0 %v51, 111
    %v149 = vpop.permute.xlu0 %148
    %150 = vrot.lane.b32.xlu0 %v52, 111
    %v151 = vpop.permute.xlu0 %150
    %152 = vrot.lane.b32.xlu0 %v53, 111
    %v153 = vpop.permute.xlu0 %152
    %154 = vrot.lane.b32.xlu0 %v54, 111
    %v155 = vpop.permute.xlu0 %154
    %vm156 = vcmp.lt.s32.totalorder %v64, 111
    %v157 = vsel %vm156, %v153, %v155
    %v158 = vsel %vm156, %v151, %v153
    %v159 = vsel %vm156, %v149, %v151
    %v160 = vsel %vm156, %v155, %v149
    %v161 = vld [vmem:[#allocation5] sm:$0xff]
    %v162 = vld [vmem:[#allocation5 + $0x8] sm:$0xff]
    %v163 = vld [vmem:[#allocation5 + $0x10] sm:$0xff]
    %v164 = vld [vmem:[#allocation5 + $0x18] sm:$0xff]
    %v165 = vld [vmem:[#allocation5 + $0x20] sm:$0xff]
    %v166 = vld [vmem:[#allocation5 + $0x28] sm:$0xff]
    %v167 = vld [vmem:[#allocation5 + $0x30] sm:$0xff]
    %v168 = vld [vmem:[#allocation5 + $0x38] sm:$0xff]
    %v169 = vld [vmem:[#allocation5 + $0x40] sm:$0xff]
    %v170 = vld [vmem:[#allocation5 + $0x48] sm:$0xff]
    %v171 = vld [vmem:[#allocation5 + $0x50] sm:$0xff]
    %v172 = vld [vmem:[#allocation5 + $0x58] sm:$0xff]
    %v173 = vld [vmem:[#allocation5 + $0x60] sm:$0xff]
    %v174 = vld [vmem:[#allocation5 + $0x68] sm:$0xff]
    %v175 = vld [vmem:[#allocation5 + $0x70] sm:$0xff]
    %v176 = vld [vmem:[#allocation5 + $0x78] sm:$0xff]
    %v177 = vld [vmem:[#allocation5 + $0x80] sm:$0xff]
    %v178 = vld [vmem:[#allocation5 + $0x88] sm:$0xff]
    %v179 = vld [vmem:[#allocation5 + $0x90] sm:$0xff]
    %v180 = vld [vmem:[#allocation5 + $0x98] sm:$0xff]
    %v181 = vld [vmem:[#allocation5 + $0xa0] sm:$0xff]
    %v182 = vld [vmem:[#allocation5 + $0xa8] sm:$0xff]
    %v183 = vld [vmem:[#allocation5 + $0xb0] sm:$0xff]
    %v184 = vld [vmem:[#allocation5 + $0xb8] sm:$0xff]
    %v185 = vld [vmem:[#allocation5 + $0xc0] sm:$0xff]
    %v186 = vld [vmem:[#allocation5 + $0xc8] sm:$0xff]
    %v187 = vld [vmem:[#allocation5 + $0xd0] sm:$0xff]
    %v188 = vld [vmem:[#allocation5 + $0xd8] sm:$0xff]
    %v189 = vld [vmem:[#allocation5 + $0xe0] sm:$0xff]
    %v190 = vld [vmem:[#allocation5 + $0xe8] sm:$0xff]
    %v191 = vld [vmem:[#allocation5 + $0xf0] sm:$0xff]
    %v192 = vld [vmem:[#allocation5 + $0xf8] sm:$0xff]
    %v193 = vld [vmem:[#allocation5 + $0x100] sm:$0xff]
    %v194 = vld [vmem:[#allocation5 + $0x108] sm:$0xff]
    %v195 = vld [vmem:[#allocation5 + $0x110] sm:$0xff]
    %v196 = vld [vmem:[#allocation5 + $0x118] sm:$0xff]
    %v197 = vmul.f32 %v69, %v161
    %v198 = vmul.f32 %v68, %v162
    %v199 = vmul.f32 %v67, %v163
    %v200 = vmul.f32 %v66, %v164
    %v201 = vmul.f32 %v82, %v165
    %v202 = vmul.f32 %v81, %v166
    %v203 = vmul.f32 %v80, %v167
    %v204 = vmul.f32 %v79, %v168
    %v205 = vmul.f32 %v95, %v169
    %v206 = vmul.f32 %v94, %v170
    %v207 = vmul.f32 %v93, %v171
    %v208 = vmul.f32 %v92, %v172
    %v209 = vmul.f32 %v108, %v173
    %v210 = vmul.f32 %v107, %v174
    %v211 = vmul.f32 %v106, %v175
    %v212 = vmul.f32 %v105, %v176
    %v213 = vmul.f32 %v51, %v177
    %v214 = vmul.f32 %v52, %v178
    %v215 = vmul.f32 %v53, %v179
    %v216 = vmul.f32 %v54, %v180
    %v217 = vmul.f32 %v120, %v181
    %v218 = vmul.f32 %v119, %v182
    %v219 = vmul.f32 %v118, %v183
    %v220 = vmul.f32 %v121, %v184
    %v221 = vmul.f32 %v133, %v185
    %v222 = vmul.f32 %v132, %v186
    %v223 = vmul.f32 %v131, %v187
    %v224 = vmul.f32 %v134, %v188
    %v225 = vmul.f32 %v146, %v189
    %v226 = vmul.f32 %v145, %v190
    %v227 = vmul.f32 %v144, %v191
    %v228 = vmul.f32 %v147, %v192
    %v229 = vmul.f32 %v159, %v193
    %v230 = vmul.f32 %v158, %v194
    %v231 = vmul.f32 %v157, %v195
    %v232 = vmul.f32 %v160, %v196
    %v233 = vld [vmem:[%s1] sm:$0xff]
    %vm234 = vcmask 588800
    %v236 = vsel %vm234, %v233, 0
    %238 = vmatpush.msra.mxu0 0.0
    %239 = vmatpush.msra.mxu0 0.0
    %240 = vmatpush.msra.mxu0 0.0
    %241 = vmatpush.msra.mxu0 0.0
    %242 = vmatpush.msra.mxu0 0.0
    %243 = vmatpush.msra.mxu0 0.0
    %244 = vmatpush.msra.mxu0 0.0
    %245 = vmatpush.msra.mxu0 %v229
    %246 = vmatpush.msra.mxu0 %v225
    %247 = vmatpush.msra.mxu0 %v221
    %248 = vmatpush.msra.mxu0 %v217
    %249 = vmatpush.msra.mxu0 %v213
    %250 = vmatpush.msra.mxu0 %v209
    %251 = vmatpush.msra.mxu0 %v205
    %252 = vmatpush.msra.mxu0 %v201
    %253 = vmatpush.msra.mxu0 %v197
    %254 = vmatmul.f32.gmra.mxu0 %v236
    %v255 = vpop.f32.mrf.mxu0
    %v256 = vadd.f32 0.0, %v255
    %257 = vdwg.mxu0
    %258 = vmatpush.msra.mxu0 0.0
    %259 = vmatpush.msra.mxu0 0.0
    %260 = vmatpush.msra.mxu0 0.0
    %261 = vmatpush.msra.mxu0 0.0
    %262 = vmatpush.msra.mxu0 0.0
    %263 = vmatpush.msra.mxu0 0.0
    %264 = vmatpush.msra.mxu0 0.0
    %265 = vmatpush.msra.mxu0 %v230
    %266 = vmatpush.msra.mxu0 %v226
    %267 = vmatpush.msra.mxu0 %v222
    %268 = vmatpush.msra.mxu0 %v218
    %269 = vmatpush.msra.mxu0 %v214
    %270 = vmatpush.msra.mxu0 %v210
    %271 = vmatpush.msra.mxu0 %v206
    %272 = vmatpush.msra.mxu0 %v202
    %273 = vmatpush.msra.mxu0 %v198
    %274 = vmatmul.f32.gmra.mxu0 %v236
    %v275 = vpop.f32.mrf.mxu0
    %v276 = vadd.f32 0.0, %v275
    %277 = vdwg.mxu0
    %278 = vmatpush.msra.mxu0 0.0
    %279 = vmatpush.msra.mxu0 0.0
    %280 = vmatpush.msra.mxu0 0.0
    %281 = vmatpush.msra.mxu0 0.0
    %282 = vmatpush.msra.mxu0 0.0
    %283 = vmatpush.msra.mxu0 0.0
    %284 = vmatpush.msra.mxu0 0.0
    %285 = vmatpush.msra.mxu0 %v231
    %286 = vmatpush.msra.mxu0 %v227
    %287 = vmatpush.msra.mxu0 %v223
    %288 = vmatpush.msra.mxu0 %v219
    %289 = vmatpush.msra.mxu0 %v215
    %290 = vmatpush.msra.mxu0 %v211
    %291 = vmatpush.msra.mxu0 %v207
    %292 = vmatpush.msra.mxu0 %v203
    %293 = vmatpush.msra.mxu0 %v199
    %294 = vmatmul.f32.gmra.mxu0 %v236
    %v295 = vpop.f32.mrf.mxu0
    %v296 = vadd.f32 0.0, %v295
    %297 = vdwg.mxu0
    %298 = vmatpush.msra.mxu0 0.0
    %299 = vmatpush.msra.mxu0 0.0
    %300 = vmatpush.msra.mxu0 0.0
    %301 = vmatpush.msra.mxu0 0.0
    %302 = vmatpush.msra.mxu0 0.0
    %303 = vmatpush.msra.mxu0 0.0
    %304 = vmatpush.msra.mxu0 0.0
    %305 = vmatpush.msra.mxu0 %v232
    %306 = vmatpush.msra.mxu0 %v228
    %307 = vmatpush.msra.mxu0 %v224
    %308 = vmatpush.msra.mxu0 %v220
    %309 = vmatpush.msra.mxu0 %v216
    %310 = vmatpush.msra.mxu0 %v212
    %311 = vmatpush.msra.mxu0 %v208
    %312 = vmatpush.msra.mxu0 %v204
    %313 = vmatpush.msra.mxu0 %v200
    %314 = vmatmul.f32.gmra.mxu0 %v236
    %v315 = vpop.f32.mrf.mxu0
    %v316 = vadd.f32 0.0, %v315
    %317 = vdwg.mxu0
    %v318 = vadd.f32 %v256, %v276
    %v319 = vadd.f32 %v318, %v296
    %v320 = vadd.f32 %v319, %v316
    %321 = vadd.xlane.f32.xlu0 %v320
    %v322 = vpop.xlane.xlu0 %321
    %v323 = vmul.f32 %v322, 0.001953125
    %v324 = vsub.f32 %v256, %v323
    %v325 = vsub.f32 %v276, %v323
    %v326 = vsub.f32 %v296, %v323
    %v327 = vsub.f32 %v316, %v323
    %v328 = vmul.f32 %v324, %v324
    %v329 = vmul.f32 %v325, %v325
    %v330 = vmul.f32 %v326, %v326
    %v331 = vmul.f32 %v327, %v327
    %v332 = vadd.f32 %v328, %v329
    %v333 = vadd.f32 %v332, %v330
    %v334 = vadd.f32 %v333, %v331
    %335 = vadd.xlane.f32.xlu0 %v334
    %v336 = vpop.xlane.xlu0 %335
    %v337 = vmul.f32 %v336, 0.001953125
    %v338 = vld [vmem:[%s3] sm:$0xff]
    %v339 = vadd.f32 %v337, 1e-05
    %v340 = vrsqrt.pop %v339
    %v341 = vmul.f32 %v340, %v339
    %v342 = vmul.f32 %v341, %v340
    %v343 = vmul.f32 0.5, %v342
    %v344 = vsub.f32 1.5, %v343
    %v345 = vmul.f32 %v340, %v344
    %vm346 = vweird.f32 %v339
    %vm347 = vweird.f32 %v340
    %vm348 = vmor %vm346, %vm347
    %v349 = vsel %vm348, %v340, %v345
    %v350 = vmul.f32 %v338, %v349
    %352 = vset.pattern.permute.xlu0 0
    %353 = vperm.xlu0 %352, %v350
    %v354 = vpop.permute.xlu0 %353
    %v356 = vmul.f32 %v324, %v354
    %v357 = vmul.f32 %v325, %v354
    %v358 = vmul.f32 %v326, %v354
    %v359 = vmul.f32 %v327, %v354
    %v360 = vld [vmem:[%s4] sm:$0xff]
    %362 = vset.pattern.permute.xlu0 0
    %363 = vperm.xlu0 %362, %v360
    %v364 = vpop.permute.xlu0 %363
    %v366 = vadd.f32 %v356, %v364
    %v367 = vadd.f32 %v357, %v364
    %v368 = vadd.f32 %v358, %v364
    %v369 = vadd.f32 %v359, %v364
    %v370 = vmax.f32 %v366, 0.0
    %v371 = vmax.f32 %v367, 0.0
    %v372 = vmax.f32 %v368, 0.0
    %v373 = vmax.f32 %v369, 0.0
    %374 = vst [vmem:[#allocation7] sm:$0xff] %v370
    %375 = vst [vmem:[#allocation7 + $0x8] sm:$0xff] %v371
    %s376 = scalar_lea.vmem [#allocation7], 16
    %377 = vst [vmem:[%s376] sm:$0xff] %v372
    %378 = vst [vmem:[%s376 + $0x8] sm:$0xff] %v373
    // Predicated region
    $region30: #{tpu_custom_call.1} parent=1 // pred_check
      _
    $region31: #{tpu_custom_call.1} parent=1 // pred_check_branch
      %380 = sbr.rel (0) target = $region33
    $region32: #{tpu_custom_call.1} parent=1 // pred_region
      %382 = vsyncadd [#allocation4], 0
      %s383 = sshll.u32 [#allocation7], 4
      %s384 = int_to_ptr.vmem [resolvable:$true] %s383
      %s385 = sshll.u32 %s5, 4
      %s386 = int_to_ptr.hbm [resolvable:$true] %s385
      %391 = dma.vmem_to_hbm [thread:$0]  %s384, 512, %s386, [#allocation4], 256, 256, 16
    $region33: #{tpu_custom_call.1} parent=1 // pred_fallthru
      _
    // Predicated region
    $region34: #{tpu_custom_call.1} parent=1 // pred_check
      _
    $region35: #{tpu_custom_call.1} parent=1 // pred_check_branch
      %393 = sbr.rel (0) target = $region37
    $region36: #{tpu_custom_call.1} parent=1 // pred_region
      %395 = dma.done [#allocation4], 512
    $region37: #{tpu_custom_call.1} parent=1 // pred_fallthru
      _
    %396 = vsyncpa [#allocation3], 1
    %397 = vsyncpa [#allocation6], 1
    %398 = vsyncpa [#allocation4], 1

</llo_original>
